<compile_context>
chip_gen: v6e
topology: v6e:2x2x1
jax: 0.10.0
libtpu: 0.0.40
codegen_flags: <defaults>
</compile_context>

<pallas_src>
import functools
import math

import jax
import jax.numpy as jnp
from jax.experimental import pallas as pl
from jax.experimental.pallas import tpu as pltpu

_LANES = 128


def _build_pe_table(d_model: int, max_len: int) -> jnp.ndarray:
    """Sinusoidal positional-encoding buffer, identical to the PyTorch __init__."""
    position = jnp.arange(max_len, dtype=jnp.float32)[:, None]                 # [max_len, 1]
    div_term = jnp.exp(jnp.arange(0, d_model, 2, dtype=jnp.float32)
                       * (-math.log(10000.0) / d_model))                       # [d_model/2]
    pe = jnp.zeros((1, max_len, d_model), dtype=jnp.float32)
    pe = pe.at[0, :, 0::2].set(jnp.sin(position * div_term))
    pe = pe.at[0, :, 1::2].set(jnp.cos(position * div_term))
    return pe


def _lowbias32(x):
    """lowbias32 integer finalizer -- plain uint32 VPU ops, works in interpret mode."""
    x = x ^ (x >> jnp.uint32(16))
    x = x * jnp.uint32(0x7FEB352D)
    x = x ^ (x >> jnp.uint32(15))
    x = x * jnp.uint32(0x846CA68B)
    x = x ^ (x >> jnp.uint32(16))
    return x


def _choose_row_tile(rows, cols, dtype_bytes, align, target_bytes=2 * 1024 * 1024):
    """Largest row-tile that is a multiple of `align`, divides `rows`, and keeps one
    buffer near ~2 MiB (per-step HBM time >> 0.35us step overhead on v5e/v6e/v7x,
    while 3 arrays x 2 buffers stays ~12 MiB of VMEM)."""
    if rows % align != 0:
        return rows                                 # full extent is always a legal block
    max_rows = max(align, min(rows, target_bytes // max(1, cols * dtype_bytes)))
    t = max(align, (max_rows // align) * align)
    while rows % t != 0:
        t -= align
    return t


def _largest_aligned_divisor_at_most(n, align, cap):
    t = (cap // align) * align
    while t >= align:
        if n % t == 0:
            return t
        t -= align
    return 0


def _make_kernel(p_drop, training, tile_rows, cols, use_hw_prng):
    apply_dropout = bool(training) and p_drop > 0.0
    keep_scale = 0.0 if p_drop >= 1.0 else 1.0 / (1.0 - p_drop)
    # round() keeps the drop-probability bias below 2**-33 (negligible).
    thresh = min(int(round(p_drop * 2.0 ** 32)), 2 ** 32 - 1)

    def kernel(seed_ref, x_ref, pe_ref, o_ref):
        # Blocks are 2D (tile_rows, cols): the size-1 batch dim is squeezed by the
        # BlockSpec, so layout handling and the dropout iota stay 2D.
        y = x_ref[...] + pe_ref[...]
        if apply_dropout:
            if use_hw_prng:
                # Hardware PRNG path (preferred on real v7x/v6e hardware): seed once
                # per grid step, draw raw bits, compare + select.  Near-free next to
                # the HBM traffic.  No interpret-mode lowering, so off by default.
                pltpu.prng_seed(seed_ref[0], pl.program_id(0), pl.program_id(1))
                bits = pltpu.bitcast(
                    pltpu.prng_random_bits((tile_rows, cols)), jnp.uint32)
            else:
                # Portable counter-hash path: mix (seed, batch, row-tile) with scalar
                # hashes into one per-tile key, then a single lowbias32 pass/element.
                seed_h = _lowbias32(seed_ref[0].astype(jnp.uint32))
                j = pl.program_id(0).astype(jnp.uint32)      # row-tile (outer axis)
                b = pl.program_id(1).astype(jnp.uint32)      # batch   (inner axis)
                key = _lowbias32(seed_h
                                 ^ (b * jnp.uint32(0x9E3779B9))
                                 ^ (j * jnp.uint32(0x85EBCA6B)))
                idx = (jax.lax.broadcasted_iota(jnp.uint32, (tile_rows, cols), 0)
                       * jnp.uint32(cols)
                       + jax.lax.broadcasted_iota(jnp.uint32, (tile_rows, cols), 1))
                bits = _lowbias32(idx ^ key)
            keep = bits >= jnp.uint32(thresh)
            y = jnp.where(keep, y * keep_scale, jnp.zeros_like(y))
        o_ref[...] = y.astype(o_ref.dtype)

    return kernel


@functools.partial(jax.jit, static_argnames=("p_drop", "training", "use_hw_prng"))
def positional_encoding(x, pe, seed, *, p_drop: float = 0.1, training: bool = False,
                        use_hw_prng: bool = False):
    """x: [B, S, D]; pe: [1, max_len, D] float32; seed: int32 array of shape [1]."""
    B, S, D = x.shape
    _, max_len, D_pe = pe.shape
    assert D_pe == D and S <= max_len
    n_flat = S * D
    dtype_bytes = jnp.dtype(x.dtype).itemsize
    align = 16 if dtype_bytes == 2 else 8          # bf16 sublane packing is (16, 128)
    cols = _LANES

    # ---- lane-dense [B, rows, 128] view -------------------------------------
    if n_flat % cols == 0:
        rows, pad = n_flat // cols, 0
        x_view = x.reshape(B, rows, cols)                            # free reshape
        if (max_len * D) % cols == 0:
            pe_base = pe.reshape(1, (max_len * D) // cols, cols)     # window into full table
        else:
            pe_base = pe.reshape(1, max_len * D)[:, :n_flat].reshape(1, rows, cols)
    else:
        # Pad the flattened per-batch slab to a multiple of 128*align so the kernel
        # only ever issues full-width (unmasked) stores; slice the pad off after.
        n_pad = -(-n_flat // (cols * align)) * (cols * align)
        rows, pad = n_pad // cols, n_pad - n_flat
        x_view = jnp.pad(x.reshape(B, n_flat), ((0, 0), (0, pad))).reshape(B, rows, cols)
        pe_flat = pe.reshape(1, max_len * D)[:, :n_flat]
        pe_base = jnp.pad(pe_flat, ((0, 0), (0, pad))).reshape(1, rows, cols)

    if x.dtype == jnp.bfloat16:
        # Halves pe DMA / resident VMEM; add runs on the native bf16 VALU (v6e/v7x).
        # TODO(synk): keep f32 pe on v5e (no bf16 VALU there; cast only adds converts).
        pe_base = pe_base.astype(jnp.bfloat16)

    tile_rows = _choose_row_tile(rows, cols, dtype_bytes, align)
    if B == 1 and rows // tile_rows < 2 and rows % align == 0:
        # v7x megacore: guarantee >= 2 steps along a "parallel" grid axis.
        t = _largest_aligned_divisor_at_most(rows, align, rows // 2)
        if t:
            tile_rows = t
    n_row_tiles = rows // tile_rows

    if tile_rows % 8 == 0:
        pe_view = pe_base                          # block tiles legally into the big table
    else:
        # tile_rows == rows but not 8-aligned: the block must equal pe's full dims.
        pe_view = pe_base if pe_base.shape[1] == rows else pe_base[:, :rows, :]

    kernel = _make_kernel(p_drop, training, tile_rows, cols, use_hw_prng)

    grid_spec = pltpu.PrefetchScalarGridSpec(
        num_scalar_prefetch=1,                     # seed lands in SMEM
        grid=(n_row_tiles, B),                     # batch innermost: pe tile stays
        in_specs=[                                 # resident in VMEM across it
            pl.BlockSpec((None, tile_rows, cols), lambda j, b, seed_ref: (b, j, 0)),  # x
            pl.BlockSpec((None, tile_rows, cols), lambda j, b, seed_ref: (0, j, 0)),  # pe
        ],
        out_specs=pl.BlockSpec((None, tile_rows, cols), lambda j, b, seed_ref: (b, j, 0)),
    )

    pe_bytes = jnp.dtype(pe_view.dtype).itemsize
    out_view = pl.pallas_call(
        kernel,
        out_shape=jax.ShapeDtypeStruct((B, rows, cols), x.dtype),
        grid_spec=grid_spec,
        compiler_params=pltpu.CompilerParams(
            dimension_semantics=("parallel", "parallel"),
            vmem_limit_bytes=32 * 1024 * 1024,
        ),
        cost_estimate=pl.CostEstimate(
            flops=B * rows * cols, transcendentals=0,
            bytes_accessed=2 * B * rows * cols * dtype_bytes + rows * cols * pe_bytes),
    )(seed, x_view, pe_view)

    if pad:
        out_view = out_view.reshape(B, rows * cols)[:, :n_flat]
    return out_view.reshape(B, S, D)


if __name__ == "__main__":
    # Small shapes consistent with the module's forward: x is [batch, seq_len, d_model].
    d_model, max_len, p_drop = 32, 64, 0.1
    B, S = 2, 8

    key = jax.random.PRNGKey(0)
    x = jax.random.normal(key, (B, S, d_model), dtype=jnp.float32)
    pe = _build_pe_table(d_model, max_len)
    seed = jnp.array([0], dtype=jnp.int32)

    ref = x + pe[:, :S]

    # Eval mode: dropout is identity; must match the pure-JAX reference.
    out_eval = jax.block_until_ready(
        positional_encoding(x, pe, seed, p_drop=p_drop, training=False))
    assert out_eval.shape == (B, S, d_model)
    assert jnp.allclose(out_eval, ref, atol=1e-5, rtol=1e-5), "eval-mode mismatch"

    # Training mode: inverted dropout.  The RNG stream differs from torch by design,
    # but every surviving element must equal (x + pe)/(1-p) and dropped ones must be 0.
    out_train = jax.block_until_ready(
        positional_encoding(x, pe, seed, p_drop=p_drop, training=True))
    assert out_train.shape == (B, S, d_model)
    scaled = ref / (1.0 - p_drop)
    ok = jnp.logical_or(jnp.isclose(out_train, scaled, atol=1e-5, rtol=1e-5),
                        out_train == 0.0)
    assert bool(jnp.all(ok)), "training-mode dropout values inconsistent"

    # Non-128-aligned fallback (padded lane-dense slab), eval mode.
    d2, s2 = 10, 3
    x2 = jax.random.normal(jax.random.PRNGKey(1), (B, s2, d2), dtype=jnp.float32)
    pe2 = _build_pe_table(d2, 16)
    out2 = jax.block_until_ready(
        positional_encoding(x2, pe2, seed, p_drop=p_drop, training=False))
    assert jnp.allclose(out2, x2 + pe2[:, :s2], atol=1e-5, rtol=1e-5), "padded-path mismatch"

    print("KERNEL_OK")
</pallas_src>

<mosaic_0001>
module attributes {stable_mosaic.version = 11 : i64} {
  func.func @kernel(%arg0: i32, %arg1: i32, %arg2: memref<1xi32, #tpu.memory_space<smem>>, %arg3: memref<1x2x128xf32, #tpu.memory_space<vmem>>, %arg4: memref<1x2x128xf32, #tpu.memory_space<vmem>>, %arg5: memref<1x2x128xf32, #tpu.memory_space<vmem>>) attributes {dimension_semantics = [#tpu.dimension_semantics<parallel>, #tpu.dimension_semantics<parallel>], iteration_bounds = array<i64: 1, 2>, scalar_prefetch = 1 : i64, scratch_operands = 0 : i64, tpu.core_type = #tpu.core_type<tc>, window_params = [{transform_indices = @transform_0, window_bounds = array<i64: 1, 2, 128>}, {transform_indices = @transform_1, window_bounds = array<i64: 1, 2, 128>}, {transform_indices = @transform_2, window_bounds = array<i64: 1, 2, 128>}]} {
    %c0 = arith.constant 0 : index
    %c0_0 = arith.constant 0 : index
    %c0_1 = arith.constant 0 : index
    %0 = vector.load %arg3[%c0, %c0_0, %c0_1] : memref<1x2x128xf32, #tpu.memory_space<vmem>>, vector<1x2x128xf32>
    %1 = vector.shape_cast %0 : vector<1x2x128xf32> to vector<2x128xf32>
    %c0_2 = arith.constant 0 : index
    %c0_3 = arith.constant 0 : index
    %c0_4 = arith.constant 0 : index
    %2 = vector.load %arg4[%c0_2, %c0_3, %c0_4] : memref<1x2x128xf32, #tpu.memory_space<vmem>>, vector<1x2x128xf32>
    %3 = vector.shape_cast %2 : vector<1x2x128xf32> to vector<2x128xf32>
    %4 = arith.addf %1, %3 : vector<2x128xf32>
    %c0_5 = arith.constant 0 : index
    %c0_6 = arith.constant 0 : index
    %c0_7 = arith.constant 0 : index
    %5 = vector.load %arg5[%c0_5, %c0_6, %c0_7] : memref<1x2x128xf32, #tpu.memory_space<vmem>>, vector<1x2x128xf32>
    %6 = vector.shape_cast %5 : vector<1x2x128xf32> to vector<2x128xf32>
    %7 = vector.shape_cast %4 : vector<2x128xf32> to vector<1x2x128xf32>
    tpu.vector_store %arg5[%c0_5, %c0_6, %c0_7], %7 {strides = array<i32>} : memref<1x2x128xf32, #tpu.memory_space<vmem>>, vector<1x2x128xf32>,
    return
  }
  func.func @transform_0(%arg0: i32, %arg1: i32, %arg2: memref<1xi32, #tpu.memory_space<smem>>) -> (i32, i32, i32) {
    %c0_i32 = arith.constant 0 : i32
    %c0_i32_0 = arith.constant 0 : i32
    return %arg1, %arg0, %c0_i32 : i32, i32, i32
  }
  func.func @transform_1(%arg0: i32, %arg1: i32, %arg2: memref<1xi32, #tpu.memory_space<smem>>) -> (i32, i32, i32) {
    %c0_i32 = arith.constant 0 : i32
    %c0_i32_0 = arith.constant 0 : i32
    %c0_i32_1 = arith.constant 0 : i32
    return %c0_i32, %arg0, %c0_i32_0 : i32, i32, i32
  }
  func.func @transform_2(%arg0: i32, %arg1: i32, %arg2: memref<1xi32, #tpu.memory_space<smem>>) -> (i32, i32, i32) {
    %c0_i32 = arith.constant 0 : i32
    %c0_i32_0 = arith.constant 0 : i32
    return %arg1, %arg0, %c0_i32 : i32, i32, i32
  }
}

</mosaic_0001>

<llo_original>
// kernel: positional_encoding.1
$region0: #{positional_encoding.1}
  #allocation0 [shape = 'u32[]', space=smem, size = 0x4, offset = 0x4, fixed_abs, tag = 'smem constant byte address 0x4 - core index']
  #allocation1 [shape = 'u32[144,128]{1,0:T(1,128)}', space=vmem, size = 0x12000, scoped, tag = 'internal scratch']
  #allocation2 [shape = 's32[1]{0}', space=sflag, size = 0x4, scoped, tag = 'scoped memory for positional_encoding.1']
  #allocation3 [shape = 's32[1]{0:T(128)S(6)}', space=smem, size = 0x200, scoped, tag = 'prefetched SMEM operand 0']
  %s0 = inlined_call_operand.<no memory space> [shape: s32[1], index: 0, kind: input, shape index: {}]
  %s1 = inlined_call_operand.vmem [shape: f32[2,2,128], index: 1, kind: input, shape index: {}]
  %s2 = inlined_call_operand.vmem [shape: f32[1,2,128], index: 2, kind: input, shape index: {}]
  %s3 = inlined_call_operand.vmem [shape: f32[2,2,128], index: 3, kind: output, shape index: {}]
  %s4 = sld [smem:[#allocation0]]
  $region41: #{positional_encoding.1} parent=0
    _
  %s6 = ssub.s32 1, %s4
  %s7 = scalar_select 0, %s6, %s4
  %8 = sst [smem:[#allocation3]] %s0
  loop: start=0, step=1, limit=4
  $region2: #{positional_encoding.1} parent=0 // loop_pre_header
    _
  $region3: #{positional_encoding.1} parent=0 // loop_header
    %s10 = sphi 0, %s14
    %p11 = scmp.ge.s32.totalorder %s10, 4
    %s17 = sphi 0, %s29
    %s18 = sphi 0, %s25
    %s19 = sphi 0, %s17
    %s20 = sphi 0, %s18
    %s21 = sphi 0, %s19
    %s22 = sphi 0, %s20
    %s34 = sphi 0, %s36
    %s37 = sphi 0, %s34
    %s38 = sphi 0, %s37
    %s54 = sphi 0, %s38
    %s60 = sphi 0, %s62
    %s63 = sphi 0, %s60
    %s64 = sphi 0, %s63
    %s80 = sphi 0, %s64
    %s88 = sphi 0, %s90
    %s91 = sphi 0, %s88
    %s92 = sphi 0, %s91
    %s108 = sphi 0, %s92
  $region4: #{positional_encoding.1} parent=0 // loop_header_branch
    %13 = sbr.rel (%p11) target = $region8
  $region5: #{positional_encoding.1} parent=0 // loop_body
    %s15 = ssub.s32 %s10, 1
    %s16 = ssub.s32 %s10, 2
    %s23 = sadd.s32 1, %s18
    %p24 = scmp.ge.s32.totalorder %s23, 2
    %s25 = scalar_select %p24, 0, %s23
    %s26 = sadd.s32 1, %s17
    %s27 = scalar_select %p24, %s26, %s17
    %p28 = scmp.ge.s32.totalorder %s27, 1
    %s29 = scalar_select %p28, 0, %s27
    %s30 = ssub.s32 %s18, %s25
    %s31 = ssub.s32 %s17, %s29
    %s32 = sor.u32 %s30, %s31
    %p33 = scmp.eq.s32.totalorder %s32, 0
    %s35 = sadd.s32 %s34, 1
    %s36 = scalar_select %p33, %s34, %s35
    %p39 = pneg %p33
    %p40 = scmp.eq.s32.totalorder %s10, 1
    %p41 = por %p39, %p40
    %p42 = scmp.ne.s32.totalorder %s34, %s37
    %p43 = scmp.eq.s32.totalorder %s10, 0
    %p44 = por %p42, %p43
    %p45 = scmp.ne.s32.totalorder %s34, %s37
    %p46 = scmp.eq.s32.totalorder %s15, 1
    %p47 = por %p45, %p46
    %p48 = scmp.ne.s32.totalorder %s37, %s38
    %p49 = scmp.eq.s32.totalorder %s15, 0
    %p50 = por %p48, %p49
    %p51 = scmp.ne.s32.totalorder %s37, %s38
    %p52 = scmp.eq.s32.totalorder %s16, 1
    %p53 = por %p51, %p52
    %p55 = scmp.ne.s32.totalorder %s38, %s54
    %p56 = scmp.eq.s32.totalorder %s16, 0
    %p57 = por %p55, %p56
    %s58 = ssub.s32 %s17, %s29
    %p59 = scmp.eq.s32.totalorder %s58, 0
    %s61 = sadd.s32 %s60, 1
    %s62 = scalar_select %p59, %s60, %s61
    %p65 = pneg %p59
    %p66 = scmp.eq.s32.totalorder %s10, 1
    %p67 = por %p65, %p66
    %p68 = scmp.ne.s32.totalorder %s60, %s63
    %p69 = scmp.eq.s32.totalorder %s10, 0
    %p70 = por %p68, %p69
    %p71 = scmp.ne.s32.totalorder %s60, %s63
    %p72 = scmp.eq.s32.totalorder %s15, 1
    %p73 = por %p71, %p72
    %p74 = scmp.ne.s32.totalorder %s63, %s64
    %p75 = scmp.eq.s32.totalorder %s15, 0
    %p76 = por %p74, %p75
    %p77 = scmp.ne.s32.totalorder %s63, %s64
    %p78 = scmp.eq.s32.totalorder %s16, 1
    %p79 = por %p77, %p78
    %p81 = scmp.ne.s32.totalorder %s64, %s80
    %p82 = scmp.eq.s32.totalorder %s16, 0
    %p83 = por %p81, %p82
    %s84 = ssub.s32 %s18, %s25
    %s85 = ssub.s32 %s17, %s29
    %s86 = sor.u32 %s84, %s85
    %p87 = scmp.eq.s32.totalorder %s86, 0
    %s89 = sadd.s32 %s88, 1
    %s90 = scalar_select %p87, %s88, %s89
    %p93 = pneg %p87
    %p94 = scmp.eq.s32.totalorder %s10, 1
    %p95 = por %p93, %p94
    %p96 = scmp.ne.s32.totalorder %s88, %s91
    %p97 = scmp.eq.s32.totalorder %s10, 0
    %p98 = por %p96, %p97
    %p99 = scmp.ne.s32.totalorder %s88, %s91
    %p100 = scmp.eq.s32.totalorder %s15, 1
    %p101 = por %p99, %p100
    %p102 = scmp.ne.s32.totalorder %s91, %s92
    %p103 = scmp.eq.s32.totalorder %s15, 0
    %p104 = por %p102, %p103
    %p105 = scmp.ne.s32.totalorder %s91, %s92
    %p106 = scmp.eq.s32.totalorder %s16, 1
    %p107 = por %p105, %p106
    %p109 = scmp.ne.s32.totalorder %s92, %s108
    %p110 = scmp.eq.s32.totalorder %s16, 0
    %p111 = por %p109, %p110
    %p112 = scmp.le.s32.totalorder 1, %s10
    %p113 = scmp.lt.s32.totalorder %s10, 3
    %p114 = pnand %p112, %p113
    %p115 = pneg %p114
    // Predicated region
    $region9: #{positional_encoding.1} parent=5 // pred_check
      _
    $region10: #{positional_encoding.1} parent=5 // pred_check_branch
      %117 = sbr.rel (%p114) target = $region12
    $region11: #{positional_encoding.1} parent=5 // pred_region
      %s118 = ssub.s32 %s10, 1
      // Predicated region
      $region13: #{positional_encoding.1} parent=11 // pred_check
        %p119 = pneg %p76
      $region14: #{positional_encoding.1} parent=11 // pred_check_branch
        %121 = sbr.rel (%p119) target = $region16
      $region15: #{positional_encoding.1} parent=11 // pred_region
        %p122 = scmp.lt.s32.totalorder %s19, 0
        %s123 = scalar_select %p122, %s19, 0
        %s124 = smul.addr %s123, 2
        %s125 = scalar_lea.vmem %s2, %s124
      $region16: #{positional_encoding.1} parent=11 // pred_fallthru
        _
    $region12: #{positional_encoding.1} parent=5 // pred_fallthru
      _
    %p126 = scmp.lt.s32.totalorder %s10, 2
    // Predicated region
    $region17: #{positional_encoding.1} parent=5 // pred_check
      %p127 = pneg %p126
    $region18: #{positional_encoding.1} parent=5 // pred_check_branch
      %129 = sbr.rel (%p127) target = $region20
    $region19: #{positional_encoding.1} parent=5 // pred_region
      // Predicated region
      $region21: #{positional_encoding.1} parent=19 // pred_check
        %p130 = pneg %p44
      $region22: #{positional_encoding.1} parent=19 // pred_check_branch
        %132 = sbr.rel (%p130) target = $region24
      $region23: #{positional_encoding.1} parent=19 // pred_region
        %p133 = scmp.lt.s32.totalorder %s18, 1
        %s134 = scalar_select %p133, %s18, 1
        %p135 = scmp.lt.s32.totalorder %s17, 0
        %s136 = scalar_select %p135, %s17, 0
        %s137 = sadd.s32 %s136, %s134
        %s138 = smul.addr %s137, 2
        %s139 = scalar_lea.vmem %s1, %s138
      $region24: #{positional_encoding.1} parent=19 // pred_fallthru
        _
    $region20: #{positional_encoding.1} parent=5 // pred_fallthru
      _
    %p140 = scmp.le.s32.totalorder 1, %s10
    %p141 = scmp.lt.s32.totalorder %s10, 3
    %p142 = pnand %p140, %p141
    %p143 = pneg %p142
    // Predicated region
    $region25: #{positional_encoding.1} parent=5 // pred_check
      _
    $region26: #{positional_encoding.1} parent=5 // pred_check_branch
      %145 = sbr.rel (%p142) target = $region28
    $region27: #{positional_encoding.1} parent=5 // pred_region
      %s146 = ssub.s32 %s10, 1
      %p147 = scmp.lt.s32.totalorder %s20, 1
      %s148 = scalar_select %p147, %s20, 1
      %p149 = scmp.lt.s32.totalorder %s19, 0
      %s150 = scalar_select %p149, %s19, 0
      %s151 = sadd.s32 %s150, %s148
      %s152 = smul.addr %s151, 2
      %s153 = scalar_lea.vmem %s1, %s152
      %p154 = pneg %p50
      %p155 = pneg %p47
      %p156 = scmp.lt.s32.totalorder %s19, 0
      %s157 = scalar_select %p156, %s19, 0
      %s158 = smul.addr %s157, 2
      %s159 = scalar_lea.vmem %s2, %s158
      %p160 = pneg %p76
      %p161 = pneg %p73
      %p162 = pneg %p104
      %p163 = pneg %p101
      %p164 = scmp.lt.s32.totalorder %s20, 1
      %s165 = scalar_select %p164, %s20, 1
      %p166 = scmp.lt.s32.totalorder %s19, 0
      %s167 = scalar_select %p166, %s19, 0
      %s168 = sadd.s32 %s167, %s165
      %s169 = smul.addr %s168, 2
      %s170 = scalar_lea.vmem %s3, %s169
      %p171 = scmp.lt.s32.totalorder %s20, 1
      %s172 = scalar_select %p171, %s20, 1
      %p173 = scmp.lt.s32.totalorder %s19, 0
      %s174 = scalar_select %p173, %s19, 0
      %s175 = sadd.s32 %s174, %s172
      %s176 = smul.addr %s175, 2
      %s177 = scalar_lea.vmem %s1, %s176
      %p178 = scmp.lt.s32.totalorder %s19, 0
      %s179 = scalar_select %p178, %s19, 0
      %s180 = smul.addr %s179, 2
      %s181 = scalar_lea.vmem %s2, %s180
      %p182 = scmp.lt.s32.totalorder %s20, 1
      %s183 = scalar_select %p182, %s20, 1
      %p184 = scmp.lt.s32.totalorder %s19, 0
      %s185 = scalar_select %p184, %s19, 0
      %s186 = sadd.s32 %s185, %s183
      %s187 = smul.addr %s186, 2
      %s188 = scalar_lea.vmem %s3, %s187
      %v189 = vld [vmem:[%s177] sm:$0x3]
      %v190 = vld [vmem:[%s181] sm:$0x3]
      %v191 = vadd.f32 %v189, %v190
      %192 = vst [vmem:[%s188] sm:$0x3] %v191
      %p193 = scmp.lt.s32.totalorder %s20, 1
      %s194 = scalar_select %p193, %s20, 1
      %p195 = scmp.lt.s32.totalorder %s19, 0
      %s196 = scalar_select %p195, %s19, 0
      %s197 = sadd.s32 %s196, %s194
      %s198 = smul.addr %s197, 2
      %s199 = scalar_lea.vmem %s3, %s198
      // Predicated region
      $region29: #{positional_encoding.1} parent=27 // pred_check
        %p200 = pneg %p101
      $region30: #{positional_encoding.1} parent=27 // pred_check_branch
        %202 = sbr.rel (%p200) target = $region32
      $region31: #{positional_encoding.1} parent=27 // pred_region
        _
      $region32: #{positional_encoding.1} parent=27 // pred_fallthru
        _
    $region28: #{positional_encoding.1} parent=5 // pred_fallthru
      _
    %p203 = scmp.le.s32.totalorder 2, %s10
    // Predicated region
    $region33: #{positional_encoding.1} parent=5 // pred_check
      %p204 = pneg %p203
    $region34: #{positional_encoding.1} parent=5 // pred_check_branch
      %206 = sbr.rel (%p204) target = $region36
    $region35: #{positional_encoding.1} parent=5 // pred_region
      %s207 = ssub.s32 %s10, 2
      // Predicated region
      $region37: #{positional_encoding.1} parent=35 // pred_check
        %p208 = pneg %p107
      $region38: #{positional_encoding.1} parent=35 // pred_check_branch
        %210 = sbr.rel (%p208) target = $region40
      $region39: #{positional_encoding.1} parent=35 // pred_region
        %p211 = scmp.lt.s32.totalorder %s22, 1
        %s212 = scalar_select %p211, %s22, 1
        %p213 = scmp.lt.s32.totalorder %s21, 0
        %s214 = scalar_select %p213, %s21, 0
        %s215 = sadd.s32 %s214, %s212
        %s216 = smul.addr %s215, 2
        %s217 = scalar_lea.vmem %s3, %s216
      $region40: #{positional_encoding.1} parent=35 // pred_fallthru
        _
    $region36: #{positional_encoding.1} parent=5 // pred_fallthru
      _
  $region6: #{positional_encoding.1} parent=0 // loop_footer
    %s14 = sadd.s32 1, %s10
  $region7: #{positional_encoding.1} parent=0 // loop_footer_branch
    %9 = sbr.rel target = $region3
  $region8: #{positional_encoding.1} parent=0 // loop_exit
    _

</llo_original>
